<compile_context>
chip_gen: v6e
topology: v6e:2x2x1
jax: 0.10.0
libtpu: 0.0.40
codegen_flags: <defaults>
</compile_context>

<pallas_src>
import jax
import jax.numpy as jnp
from jax.experimental import pallas as pl
from jax.experimental.pallas import tpu as pltpu


def _round_up(n, m):
    return ((n + m - 1) // m) * m


def _mlp_kernel(x_ref, ws_ref, small_ref, o_ref):
    # Static shapes:
    #   x_ref     (TB, F)       F = true in_features (24), unpadded
    #   ws_ref    (F + HP, HP)  rows [0:F] = W0 (F x HP), rows [F:] = W1 (HP x HP)
    #   small_ref (8, HP)       row0 = b0, row1 = b1, row2 = w2-as-row, row3[0] = b2
    #   o_ref     (TB, 1)
    F = x_ref.shape[-1]
    HP = ws_ref.shape[-1]

    x = x_ref[...]                                   # (TB, F)
    w0 = ws_ref[0:F, :]                              # (F, HP)   F % 8 == 0
    w1 = ws_ref[F:F + HP, :]                         # (HP, HP)
    small = small_ref[...]                           # (8, HP)
    b0 = small[0:1, :]
    b1 = small[1:2, :]
    w2 = small[2:3, :]
    b2 = small[3:4, 0:1]                             # (1, 1)

    # Layer 0: MXU contraction with K = F (Mosaic zero-masks the unaligned K).
    z0 = jnp.dot(x, w0, preferred_element_type=jnp.float32) + b0
    y0 = jnp.maximum(z0, 0.0)                        # (TB, HP)
    # Layer 1: fully (8,128)-aligned MXU contraction.
    z1 = jnp.dot(y0, w1, preferred_element_type=jnp.float32) + b1
    y1 = jnp.maximum(z1, 0.0)                        # (TB, HP)
    # Layer 2: single output unit -> VPU multiply + XLU lane reduction.
    o_ref[...] = jnp.sum(y1 * w2, axis=-1, keepdims=True) + b2


def pack_params(w0, b0, w1, b1, w2, b2):
    """One-time (init-time) packing of all parameters into TWO TPU-friendly arrays.

    w0: [F, H]  b0: [H]   w1: [H, H]  b1: [H]   w2: [H, 1]  b2: [1]
    Returns (ws, small):
      ws    : [F + HP, HP] f32, rows [0:F] = W0, rows [F:F+H] = W1 (zero padded)
      small : [8, HP]      f32, row0=b0, row1=b1, row2=w2[:,0], row3[0]=b2
    Call ONCE at init, not per forward call.
    """
    F, H = w0.shape
    HP = _round_up(H, 128)
    assert F % 8 == 0, "in_features must be sublane (8) aligned (spec: 24)"

    ws = jnp.zeros((F + HP, HP), jnp.float32)
    ws = ws.at[:F, :H].set(w0.astype(jnp.float32))
    ws = ws.at[F:F + H, :H].set(w1.astype(jnp.float32))

    small = jnp.zeros((8, HP), jnp.float32)
    small = small.at[0, :H].set(b0.astype(jnp.float32))
    small = small.at[1, :H].set(b1.astype(jnp.float32))
    small = small.at[2, :H].set(w2[:, 0].astype(jnp.float32))
    small = small.at[3, 0].set(jnp.asarray(b2, jnp.float32).reshape(()))
    return ws, small


@jax.jit
def mlp_forward(x, ws, small):
    """Runs the 3-layer MLP as a single Pallas kernel.

    x: [B, F] float32 (unpadded, F = 24); ws/small from pack_params.
    Returns [B, 1] float32.
    """
    B, F = x.shape
    R, HP = ws.shape

    # One block at small batch; 256-row blocks at scale so the "parallel" batch
    # axis can be split across v7x's two TensorCores.
    TB = B if B <= 256 else 256
    grid = (pl.cdiv(B, TB),)

    flops = 2 * B * (F * HP + HP * HP) + 4 * B * HP
    bytes_accessed = 4 * (x.size + ws.size + small.size + B)

    return pl.pallas_call(
        _mlp_kernel,
        out_shape=jax.ShapeDtypeStruct((B, 1), jnp.float32),  # true output shape
        grid=grid,
        in_specs=[
            pl.BlockSpec((TB, F), lambda i: (i, 0)),    # x: tiled over batch
            pl.BlockSpec((R, HP), lambda i: (0, 0)),    # weights: VMEM-resident
            pl.BlockSpec((8, HP), lambda i: (0, 0)),    # packed biases / w2 / b2
        ],
        out_specs=pl.BlockSpec((TB, 1), lambda i: (i, 0)),
        compiler_params=pltpu.CompilerParams(
            dimension_semantics=("parallel",)),
        cost_estimate=pl.CostEstimate(
            flops=flops, transcendentals=0, bytes_accessed=bytes_accessed),
    )(x, ws, small)


def init_params(key, num_ing, num_borigin, hidden_size):
    """Deterministic init mimicking torch.nn.Linear (uniform +/- 1/sqrt(fan_in))."""
    in_features = num_ing + 1 + num_borigin
    k0, k1, k2, k3, k4, k5 = jax.random.split(key, 6)

    def uinit(k, shape, fan_in):
        bound = 1.0 / jnp.sqrt(jnp.float32(fan_in))
        return jax.random.uniform(k, shape, jnp.float32, -bound, bound)

    # stored as [in, out] (transposed from PyTorch's [out, in])
    w0 = uinit(k0, (in_features, hidden_size), in_features)
    b0 = uinit(k1, (hidden_size,), in_features)
    w1 = uinit(k2, (hidden_size, hidden_size), hidden_size)
    b1 = uinit(k3, (hidden_size,), hidden_size)
    w2 = uinit(k4, (hidden_size, 1), hidden_size)
    b2 = uinit(k5, (1,), hidden_size)
    return w0, b0, w1, b1, w2, b2


if __name__ == "__main__":
    # Shapes consistent with the module's forward:
    #   num_ing = 7, num_borigin = 16  ->  in_features = 7 + 1 + 16 = 24
    num_ing = 7
    num_borigin = 16
    hidden_size = 100
    batch = 8

    key = jax.random.PRNGKey(0)
    kx, kp = jax.random.split(key)

    # Synthetic normalized feature matrix x = cat([ing, coco_pct, borigin], dim=1)
    ing_raw = jax.random.normal(jax.random.fold_in(kx, 0), (batch, num_ing), jnp.float32)
    coco_raw = jax.random.normal(jax.random.fold_in(kx, 1), (batch,), jnp.float32)
    bor_raw = jax.random.normal(jax.random.fold_in(kx, 2), (batch, num_borigin), jnp.float32)

    def norm(a):
        # match torch.std (unbiased, ddof=1) over the whole tensor
        mean = jnp.mean(a)
        std = jnp.std(a, ddof=1)
        return (a - mean) / std

    ing = norm(ing_raw)
    coco_pct = norm(coco_raw).reshape(-1, 1)
    borigin = norm(bor_raw)
    x = jnp.concatenate([ing, coco_pct, borigin], axis=1)  # [batch, 24]

    w0, b0, w1, b1, w2, b2 = init_params(kp, num_ing, num_borigin, hidden_size)

    # One-time packing at init (hoisted out of the per-call path).
    ws, small = jax.block_until_ready(pack_params(w0, b0, w1, b1, w2, b2))

    y_pred = mlp_forward(x, ws, small)
    jax.block_until_ready(y_pred)

    # Pure-JAX reference check of the kernel.
    y0 = jnp.maximum(x @ w0 + b0, 0.0)
    y1 = jnp.maximum(y0 @ w1 + b1, 0.0)
    y_ref = y1 @ w2 + b2
    assert y_pred.shape == (batch, 1)
    assert jnp.allclose(y_pred, y_ref, atol=1e-5, rtol=1e-5)

    print("KERNEL_OK")
</pallas_src>

<mosaic_0001>
module attributes {stable_mosaic.version = 11 : i64} {
  func.func @_mlp_kernel(%arg0: i32, %arg1: memref<8x24xf32, #tpu.memory_space<vmem>>, %arg2: memref<152x128xf32, #tpu.memory_space<vmem>>, %arg3: memref<8x128xf32, #tpu.memory_space<vmem>>, %arg4: memref<8x1xf32, #tpu.memory_space<vmem>>) attributes {dimension_semantics = [#tpu.dimension_semantics<parallel>], iteration_bounds = array<i64: 1>, scalar_prefetch = 0 : i64, scratch_operands = 0 : i64, tpu.core_type = #tpu.core_type<tc>, window_params = [{transform_indices = @transform_0, window_bounds = array<i64: 8, 24>}, {pipeline_mode = #tpu.pipeline_mode<synchronous>, transform_indices = @transform_1, window_bounds = array<i64: 152, 128>}, {pipeline_mode = #tpu.pipeline_mode<synchronous>, transform_indices = @transform_2, window_bounds = array<i64: 8, 128>}, {transform_indices = @transform_3, window_bounds = array<i64: 8, 1>}]} {
    %c0 = arith.constant 0 : index
    %c0_0 = arith.constant 0 : index
    %0 = vector.load %arg1[%c0, %c0_0] : memref<8x24xf32, #tpu.memory_space<vmem>>, vector<8x24xf32>
    %c0_1 = arith.constant 0 : index
    %c0_2 = arith.constant 0 : index
    %1 = vector.load %arg2[%c0_1, %c0_2] : memref<152x128xf32, #tpu.memory_space<vmem>>, vector<24x128xf32>
    %c24 = arith.constant 24 : index
    %c0_3 = arith.constant 0 : index
    %2 = vector.load %arg2[%c24, %c0_3] : memref<152x128xf32, #tpu.memory_space<vmem>>, vector<128x128xf32>
    %c0_4 = arith.constant 0 : index
    %c0_5 = arith.constant 0 : index
    %3 = vector.load %arg3[%c0_4, %c0_5] : memref<8x128xf32, #tpu.memory_space<vmem>>, vector<8x128xf32>
    %4 = vector.extract_strided_slice %3 {offsets = [0, 0], sizes = [1, 128], strides = [1, 1]} : vector<8x128xf32> to vector<1x128xf32>
    %5 = vector.extract_strided_slice %3 {offsets = [1, 0], sizes = [1, 128], strides = [1, 1]} : vector<8x128xf32> to vector<1x128xf32>
    %6 = vector.extract_strided_slice %3 {offsets = [2, 0], sizes = [1, 128], strides = [1, 1]} : vector<8x128xf32> to vector<1x128xf32>
    %7 = vector.extract_strided_slice %3 {offsets = [3, 0], sizes = [1, 1], strides = [1, 1]} : vector<8x128xf32> to vector<1x1xf32>
    %cst = arith.constant dense<0.000000e+00> : vector<8x128xf32>
    %8 = tpu.matmul %0, %1, %cst {dimension_numbers = #tpu.dot_dimension_numbers<[1], [0], [0], [1], [0, 0, 1, 1], [], []>} : vector<8x24xf32>, vector<24x128xf32>, vector<8x128xf32> -> vector<8x128xf32>
    %9 = vector.broadcast %4 : vector<1x128xf32> to vector<8x128xf32>
    %10 = arith.addf %8, %9 : vector<8x128xf32>
    %cst_6 = arith.constant 0.000000e+00 : f32
    %11 = vector.broadcast %cst_6 : f32 to vector<8x128xf32>
    %12 = arith.maximumf %10, %11 : vector<8x128xf32>
    %cst_7 = arith.constant dense<0.000000e+00> : vector<8x128xf32>
    %13 = tpu.matmul %12, %2, %cst_7 {dimension_numbers = #tpu.dot_dimension_numbers<[1], [0], [0], [1], [0, 0, 1, 1], [], []>} : vector<8x128xf32>, vector<128x128xf32>, vector<8x128xf32> -> vector<8x128xf32>
    %14 = vector.broadcast %5 : vector<1x128xf32> to vector<8x128xf32>
    %15 = arith.addf %13, %14 : vector<8x128xf32>
    %cst_8 = arith.constant 0.000000e+00 : f32
    %16 = vector.broadcast %cst_8 : f32 to vector<8x128xf32>
    %17 = arith.maximumf %15, %16 : vector<8x128xf32>
    %18 = vector.broadcast %6 : vector<1x128xf32> to vector<8x128xf32>
    %19 = arith.mulf %17, %18 : vector<8x128xf32>
    %cst_9 = arith.constant dense<0.000000e+00> : vector<8xf32>
    %20 = vector.multi_reduction <add>, %19, %cst_9 [1] : vector<8x128xf32> to vector<8xf32>
    %21 = vector.shape_cast %20 : vector<8xf32> to vector<8x1xf32>
    %22 = vector.broadcast %7 : vector<1x1xf32> to vector<8x1xf32>
    %23 = arith.addf %21, %22 : vector<8x1xf32>
    %c0_10 = arith.constant 0 : index
    %c0_11 = arith.constant 0 : index
    %24 = vector.load %arg4[%c0_10, %c0_11] : memref<8x1xf32, #tpu.memory_space<vmem>>, vector<8x1xf32>
    tpu.vector_store %arg4[%c0_10, %c0_11], %23 {strides = array<i32>} : memref<8x1xf32, #tpu.memory_space<vmem>>, vector<8x1xf32>,
    return
  }
  func.func @transform_0(%arg0: i32) -> (i32, i32) {
    %c0_i32 = arith.constant 0 : i32
    %c0_i32_0 = arith.constant 0 : i32
    return %arg0, %c0_i32 : i32, i32
  }
  func.func @transform_1(%arg0: i32) -> (i32, i32) {
    %c0_i32 = arith.constant 0 : i32
    %c0_i32_0 = arith.constant 0 : i32
    %c0_i32_1 = arith.constant 0 : i32
    return %c0_i32, %c0_i32_0 : i32, i32
  }
  func.func @transform_2(%arg0: i32) -> (i32, i32) {
    %c0_i32 = arith.constant 0 : i32
    %c0_i32_0 = arith.constant 0 : i32
    %c0_i32_1 = arith.constant 0 : i32
    return %c0_i32, %c0_i32_0 : i32, i32
  }
  func.func @transform_3(%arg0: i32) -> (i32, i32) {
    %c0_i32 = arith.constant 0 : i32
    %c0_i32_0 = arith.constant 0 : i32
    return %arg0, %c0_i32 : i32, i32
  }
}

</mosaic_0001>

<llo_original>
// kernel: mlp_forward.1
$region0: #{mlp_forward.1}
  #allocation0 [shape = 'u32[]', space=smem, size = 0x4, offset = 0x4, fixed_abs, tag = 'smem constant byte address 0x4 - core index']
  #allocation1 [shape = 'u32[144,128]{1,0:T(1,128)}', space=vmem, size = 0x12000, scoped, tag = 'internal scratch']
  %s0 = inlined_call_operand.hbm [shape: f32[8,24], index: 0, kind: input, shape index: {}]
  %s1 = inlined_call_operand.hbm [shape: f32[152,128], index: 1, kind: input, shape index: {}]
  %s2 = inlined_call_operand.hbm [shape: f32[8,128], index: 2, kind: input, shape index: {}]
  %s3 = inlined_call_operand.vmem [shape: f32[8,1], index: 3, kind: output, shape index: {}]
  %s4 = sld [smem:[#allocation0]]
  $region34: #{mlp_forward.1} parent=0
    _
  %s6 = ssub.s32 1, %s4
  %s7 = scalar_select 0, %s6, %s4
  $region1: #{mlp_forward.1} parent=0
    #allocation2 [shape = 'u8[4096]{0}', space=vmem, size = 0x1000, scoped, tag = 'input window, operand 0, single buffered']
    #allocation3 [shape = 's32[1]{0}', space=sflag, size = 0x4, scoped, tag = 'scoped memory for mlp_forward.1']
    #allocation4 [shape = 'u8[77824]{0}', space=vmem, size = 0x13000, scoped, tag = 'input window, operand 1, single buffered']
    #allocation5 [shape = 's32[1]{0}', space=sflag, size = 0x4, scoped, tag = 'scoped memory for mlp_forward.1']
    #allocation6 [shape = 'u8[4096]{0}', space=vmem, size = 0x1000, scoped, tag = 'input window, operand 2, single buffered']
    %8 = vsyncpa [#allocation3], 0
    %9 = vsyncpa [#allocation5], 0
    // Predicated region
    $region2: #{mlp_forward.1} parent=1 // pred_check
      _
    $region3: #{mlp_forward.1} parent=1 // pred_check_branch
      %11 = sbr.rel (0) target = $region5
    $region4: #{mlp_forward.1} parent=1 // pred_region
      %s13 = ssub.s32 128, 128
      %14 = vsyncadd [#allocation3], %s13
      %s16 = sshll.u32 [#allocation2], 4
      %s17 = int_to_ptr.vmem [resolvable:$true] %s16
      %19 = dma.hbm_to_vmem [thread:$0]  %s0, 128, %s17, [#allocation3]
    $region5: #{mlp_forward.1} parent=1 // pred_fallthru
      _
    // Predicated region
    $region6: #{mlp_forward.1} parent=1 // pred_check
      _
    $region7: #{mlp_forward.1} parent=1 // pred_check_branch
      %21 = sbr.rel (0) target = $region9
    $region8: #{mlp_forward.1} parent=1 // pred_region
      %s23 = ssub.s32 2432, 2432
      %24 = vsyncadd [#allocation5], %s23
      %s25 = sshll.u32 [#allocation4], 4
      %s26 = int_to_ptr.vmem [resolvable:$true] %s25
      %31 = dma.hbm_to_vmem [thread:$0]  %s1, 2432, %s26, [#allocation5], 128, 128, 8
    $region9: #{mlp_forward.1} parent=1 // pred_fallthru
      _
    // Predicated region
    $region10: #{mlp_forward.1} parent=1 // pred_check
      _
    $region11: #{mlp_forward.1} parent=1 // pred_check_branch
      %33 = sbr.rel (0) target = $region13
    $region12: #{mlp_forward.1} parent=1 // pred_region
      %s35 = ssub.s32 128, 128
      %36 = vsyncadd [#allocation5], %s35
      %s38 = sshll.u32 [#allocation6], 4
      %s39 = int_to_ptr.vmem [resolvable:$true] %s38
      %41 = dma.hbm_to_vmem [thread:$0]  %s2, 128, %s39, [#allocation5]
    $region13: #{mlp_forward.1} parent=1 // pred_fallthru
      _
    // Predicated region
    $region14: #{mlp_forward.1} parent=1 // pred_check
      _
    $region15: #{mlp_forward.1} parent=1 // pred_check_branch
      %43 = sbr.rel (0) target = $region17
    $region16: #{mlp_forward.1} parent=1 // pred_region
      %44 = dma.done [#allocation3], 128
    $region17: #{mlp_forward.1} parent=1 // pred_fallthru
      _
    // Predicated region
    $region18: #{mlp_forward.1} parent=1 // pred_check
      _
    $region19: #{mlp_forward.1} parent=1 // pred_check_branch
      %46 = sbr.rel (0) target = $region21
    $region20: #{mlp_forward.1} parent=1 // pred_region
      %47 = dma.done [#allocation5], 2432
    $region21: #{mlp_forward.1} parent=1 // pred_fallthru
      _
    // Predicated region
    $region22: #{mlp_forward.1} parent=1 // pred_check
      _
    $region23: #{mlp_forward.1} parent=1 // pred_check_branch
      %49 = sbr.rel (0) target = $region25
    $region24: #{mlp_forward.1} parent=1 // pred_region
      %50 = dma.done [#allocation5], 128
    $region25: #{mlp_forward.1} parent=1 // pred_fallthru
      _
    %v51 = vld [vmem:[#allocation2] sm:$0xff]
    %v52 = vld [vmem:[#allocation4] sm:$0xff]
    %v53 = vld [vmem:[#allocation4 + $0x8] sm:$0xff]
    %v54 = vld [vmem:[#allocation4 + $0x10] sm:$0xff]
    %v55 = vld [vmem:[#allocation4 + $0x18] sm:$0xff]
    %v56 = vld [vmem:[#allocation4 + $0x20] sm:$0xff]
    %v57 = vld [vmem:[#allocation4 + $0x28] sm:$0xff]
    %v58 = vld [vmem:[#allocation4 + $0x30] sm:$0xff]
    %v59 = vld [vmem:[#allocation4 + $0x38] sm:$0xff]
    %v60 = vld [vmem:[#allocation4 + $0x40] sm:$0xff]
    %v61 = vld [vmem:[#allocation4 + $0x48] sm:$0xff]
    %v62 = vld [vmem:[#allocation4 + $0x50] sm:$0xff]
    %v63 = vld [vmem:[#allocation4 + $0x58] sm:$0xff]
    %v64 = vld [vmem:[#allocation4 + $0x60] sm:$0xff]
    %v65 = vld [vmem:[#allocation4 + $0x68] sm:$0xff]
    %v66 = vld [vmem:[#allocation4 + $0x70] sm:$0xff]
    %v67 = vld [vmem:[#allocation4 + $0x78] sm:$0xff]
    %v68 = vld [vmem:[#allocation4 + $0x80] sm:$0xff]
    %v69 = vld [vmem:[#allocation4 + $0x88] sm:$0xff]
    %v70 = vld [vmem:[#allocation4 + $0x90] sm:$0xff]
    %v71 = vld [vmem:[#allocation6] sm:$0xff]
    %v72 = vlaneseq
    %v73 = vshrl.u32 %v72, 7
    %v74 = vsub.s32 0, %v73
    %v75 = vrot.slane %v71, %v74
    %vm76 = vcmask 195584
    %v78 = vsel %vm76, %v51, 0
    %80 = vmatprep.subr.mxu0 0.0
    %81 = vmatpush1.msra.mxu0 0.0
    %82 = vmatprep.subr.mxu0 0.0
    %83 = vmatpush1.msra.mxu0 0.0
    %84 = vmatprep.subr.mxu0 0.0
    %85 = vmatpush1.msra.mxu0 0.0
    %86 = vmatprep.subr.mxu0 0.0
    %87 = vmatpush1.msra.mxu0 0.0
    %88 = vmatprep.subr.mxu0 0.0
    %89 = vmatpush1.msra.mxu0 0.0
    %90 = vmatprep.subr.mxu0 0.0
    %91 = vmatpush1.msra.mxu0 0.0
    %92 = vmatprep.subr.mxu0 0.0
    %93 = vmatpush1.msra.mxu0 0.0
    %94 = vmatprep.subr.mxu0 0.0
    %95 = vmatpush1.msra.mxu0 0.0
    %96 = vmatprep.subr.mxu0 0.0
    %97 = vmatpush1.msra.mxu0 0.0
    %98 = vmatprep.subr.mxu0 0.0
    %99 = vmatpush1.msra.mxu0 0.0
    %100 = vmatprep.subr.mxu0 0.0
    %101 = vmatpush1.msra.mxu0 0.0
    %102 = vmatprep.subr.mxu0 0.0
    %103 = vmatpush1.msra.mxu0 0.0
    %104 = vmatprep.subr.mxu0 0.0
    %105 = vmatpush1.msra.mxu0 0.0
    %106 = vmatprep.subr.mxu0 0.0
    %107 = vmatpush1.msra.mxu0 %v54
    %108 = vmatprep.subr.mxu0 0.0
    %109 = vmatpush1.msra.mxu0 %v53
    %110 = vmatprep.subr.mxu0 0.0
    %111 = vmatpush1.msra.mxu0 %v52
    %112 = vmatprep.subr.mxu0 0.0
    %113 = vmatpush2.msra.mxu0 0.0
    %114 = vmatprep.subr.mxu0 0.0
    %115 = vmatpush2.msra.mxu0 0.0
    %116 = vmatprep.subr.mxu0 0.0
    %117 = vmatpush2.msra.mxu0 0.0
    %118 = vmatprep.subr.mxu0 0.0
    %119 = vmatpush2.msra.mxu0 0.0
    %120 = vmatprep.subr.mxu0 0.0
    %121 = vmatpush2.msra.mxu0 0.0
    %122 = vmatprep.subr.mxu0 0.0
    %123 = vmatpush2.msra.mxu0 0.0
    %124 = vmatprep.subr.mxu0 0.0
    %125 = vmatpush2.msra.mxu0 0.0
    %126 = vmatprep.subr.mxu0 0.0
    %127 = vmatpush2.msra.mxu0 0.0
    %128 = vmatprep.subr.mxu0 0.0
    %129 = vmatpush2.msra.mxu0 0.0
    %130 = vmatprep.subr.mxu0 0.0
    %131 = vmatpush2.msra.mxu0 0.0
    %132 = vmatprep.subr.mxu0 0.0
    %133 = vmatpush2.msra.mxu0 0.0
    %134 = vmatprep.subr.mxu0 0.0
    %135 = vmatpush2.msra.mxu0 0.0
    %136 = vmatprep.subr.mxu0 0.0
    %137 = vmatpush2.msra.mxu0 0.0
    %138 = vmatprep.subr.mxu0 0.0
    %139 = vmatpush2.msra.mxu0 0.0
    %140 = vmatprep.subr.mxu0 0.0
    %141 = vmatpush2.msra.mxu0 0.0
    %142 = vmatprep.subr.mxu0 0.0
    %143 = vmatpush2.msra.mxu0 0.0
    %144 = vmatprep.mubr.f32.mxu0 0.0
    %145 = vmatmul.mubr.f32.gmra.mxu0 %v78
    %v146 = vpop.f32.mrf.mxu0
    %v147 = vadd.f32 %v75, %v146
    %v148 = vpop.f32.mrf.mxu0
    %149 = vdwg.mxu0
    %v150 = vmax.f32 %v147, 0.0
    %v151 = vlaneseq
    %v152 = vshrl.u32 %v151, 7
    %v153 = vsub.s32 1, %v152
    %v154 = vrot.slane %v71, %v153
    %155 = vmatprep.subr.mxu0 0.0
    %156 = vmatpush1.msra.mxu0 %v70
    %157 = vmatprep.subr.mxu0 0.0
    %158 = vmatpush1.msra.mxu0 %v69
    %159 = vmatprep.subr.mxu0 0.0
    %160 = vmatpush1.msra.mxu0 %v68
    %161 = vmatprep.subr.mxu0 0.0
    %162 = vmatpush1.msra.mxu0 %v67
    %163 = vmatprep.subr.mxu0 0.0
    %164 = vmatpush1.msra.mxu0 %v66
    %165 = vmatprep.subr.mxu0 0.0
    %166 = vmatpush1.msra.mxu0 %v65
    %167 = vmatprep.subr.mxu0 0.0
    %168 = vmatpush1.msra.mxu0 %v64
    %169 = vmatprep.subr.mxu0 0.0
    %170 = vmatpush1.msra.mxu0 %v63
    %171 = vmatprep.subr.mxu0 0.0
    %172 = vmatpush1.msra.mxu0 %v62
    %173 = vmatprep.subr.mxu0 0.0
    %174 = vmatpush1.msra.mxu0 %v61
    %175 = vmatprep.subr.mxu0 0.0
    %176 = vmatpush1.msra.mxu0 %v60
    %177 = vmatprep.subr.mxu0 0.0
    %178 = vmatpush1.msra.mxu0 %v59
    %179 = vmatprep.subr.mxu0 0.0
    %180 = vmatpush1.msra.mxu0 %v58
    %181 = vmatprep.subr.mxu0 0.0
    %182 = vmatpush1.msra.mxu0 %v57
    %183 = vmatprep.subr.mxu0 0.0
    %184 = vmatpush1.msra.mxu0 %v56
    %185 = vmatprep.subr.mxu0 0.0
    %186 = vmatpush1.msra.mxu0 %v55
    %187 = vmatprep.subr.mxu0 0.0
    %188 = vmatpush2.msra.mxu0 0.0
    %189 = vmatprep.subr.mxu0 0.0
    %190 = vmatpush2.msra.mxu0 0.0
    %191 = vmatprep.subr.mxu0 0.0
    %192 = vmatpush2.msra.mxu0 0.0
    %193 = vmatprep.subr.mxu0 0.0
    %194 = vmatpush2.msra.mxu0 0.0
    %195 = vmatprep.subr.mxu0 0.0
    %196 = vmatpush2.msra.mxu0 0.0
    %197 = vmatprep.subr.mxu0 0.0
    %198 = vmatpush2.msra.mxu0 0.0
    %199 = vmatprep.subr.mxu0 0.0
    %200 = vmatpush2.msra.mxu0 0.0
    %201 = vmatprep.subr.mxu0 0.0
    %202 = vmatpush2.msra.mxu0 0.0
    %203 = vmatprep.subr.mxu0 0.0
    %204 = vmatpush2.msra.mxu0 0.0
    %205 = vmatprep.subr.mxu0 0.0
    %206 = vmatpush2.msra.mxu0 0.0
    %207 = vmatprep.subr.mxu0 0.0
    %208 = vmatpush2.msra.mxu0 0.0
    %209 = vmatprep.subr.mxu0 0.0
    %210 = vmatpush2.msra.mxu0 0.0
    %211 = vmatprep.subr.mxu0 0.0
    %212 = vmatpush2.msra.mxu0 0.0
    %213 = vmatprep.subr.mxu0 0.0
    %214 = vmatpush2.msra.mxu0 0.0
    %215 = vmatprep.subr.mxu0 0.0
    %216 = vmatpush2.msra.mxu0 0.0
    %217 = vmatprep.subr.mxu0 0.0
    %218 = vmatpush2.msra.mxu0 0.0
    %219 = vmatprep.mubr.f32.mxu0 0.0
    %220 = vmatmul.mubr.f32.gmra.mxu0 %v150
    %v221 = vpop.f32.mrf.mxu0
    %v222 = vadd.f32 %v154, %v221
    %v223 = vpop.f32.mrf.mxu0
    %224 = vdwg.mxu0
    %v225 = vmax.f32 %v222, 0.0
    %v226 = vlaneseq
    %v227 = vshrl.u32 %v226, 7
    %v228 = vsub.s32 2, %v227
    %v229 = vrot.slane %v71, %v228
    %v230 = vmul.f32 %v225, %v229
    %231 = vadd.xlane.f32.xlu0 %v230
    %v232 = vpop.xlane.xlu0 %231
    %v233 = vlaneseq
    %v234 = vshrl.u32 %v233, 7
    %v235 = vsub.s32 3, %v234
    %v236 = vrot.slane %v71, %v235
    %v237 = vadd.f32 %v232, %v236
    %vm238 = vcmask 7168
    %239 = vst.msk [vmem:[%s3] sm:$0xff] %vm238, %v237
    // Predicated region
    $region26: #{mlp_forward.1} parent=1 // pred_check
      _
    $region27: #{mlp_forward.1} parent=1 // pred_check_branch
      %241 = sbr.rel (0) target = $region29
    $region28: #{mlp_forward.1} parent=1 // pred_region
      _
    $region29: #{mlp_forward.1} parent=1 // pred_fallthru
      _
    // Predicated region
    $region30: #{mlp_forward.1} parent=1 // pred_check
      _
    $region31: #{mlp_forward.1} parent=1 // pred_check_branch
      %243 = sbr.rel (0) target = $region33
    $region32: #{mlp_forward.1} parent=1 // pred_region
      _
    $region33: #{mlp_forward.1} parent=1 // pred_fallthru
      _
    %244 = vsyncpa [#allocation3], 1
    %245 = vsyncpa [#allocation5], 1

</llo_original>
